<compile_context>
chip_gen: v5e
topology: v5e:2x2
jax: 0.10.0
libtpu: 0.0.40
codegen_flags: <defaults>
</compile_context>

<pallas_src>
import functools

import jax
import jax.numpy as jnp
from jax.experimental import pallas as pl
from jax.experimental.pallas import tpu as pltpu

LANES = 128
SUBLANES = 8
MAX_BLOCK_ROWS = 1024      # 1024 x 128 f32 = 512 KiB per input tile
PAD_LOGIT = -1.0e4         # with target 0: bce, sigmoid, focal all underflow to exactly 0.0


def _mixed_loss_kernel(x_ref, t_ref, out_ref, *, gamma):
    s_idx = pl.program_id(1)

    @pl.when(s_idx == 0)
    def _():
        out_ref[...] = jnp.zeros_like(out_ref)

    x = x_ref[...].astype(jnp.float32)
    t = t_ref[...].astype(jnp.float32)

    # softplus(-x) = max(-x, 0) + log(1 + exp(-|x|))   (== -log_sigmoid(x), stable;
    # identical to the original max_val + log(exp(-max_val) + exp(-x - max_val)))
    sp_negx = jnp.maximum(-x, 0.0) + jnp.log(1.0 + jnp.exp(-jnp.abs(x)))
    bce = x - x * t + sp_negx                  # BCE-with-logits, original formulation
    sig = jnp.exp(-sp_negx)                    # sigmoid(x), reuses softplus (no divide)

    # invprobs = log_sigmoid(-x * (2t - 1)) = -softplus(x * (2t - 1)); keep the general
    # (non-binary-target) form so semantics match the PyTorch module exactly.
    z = -x * (t * 2.0 - 1.0)
    sp_negz = jnp.maximum(-z, 0.0) + jnp.log(1.0 + jnp.exp(-jnp.abs(z)))
    focal_elem = jnp.exp(-gamma * sp_negz) * bce

    def fold(v):
        # (block_rows, 128) -> (8, 128): sum over whole vregs, pure VALU adds,
        # no cross-lane/XLU reduction inside the hot loop.
        return jnp.sum(v.reshape(-1, SUBLANES, LANES), axis=0)

    out_ref[0] += fold(focal_elem)   # focal loss sum
    out_ref[1] += fold(sig * t)      # intersection
    out_ref[2] += fold(sig)          # sigmoid(input) sum
    out_ref[3] += fold(t)            # target sum


def mixed_loss(x, target, *, alpha, gamma):
    """alpha * FocalLoss(gamma)(x, target) - log(dice_loss(x, target))."""
    if target.shape != x.shape:
        raise ValueError(
            f"Target size ({target.shape}) must be the same as input size ({x.shape})"
        )

    n_total = int(x.size)
    rows = pl.cdiv(n_total, LANES)
    block_rows = min(MAX_BLOCK_ROWS, pl.cdiv(rows, SUBLANES) * SUBLANES)
    nb = pl.cdiv(rows, block_rows)
    # Leading grid axis can be sharded across the 2 TensorCores on v7x; it is a
    # plain loop (harmless) on v5e/v6e.
    num_parallel = 2 if nb >= 2 else 1
    nb_padded = pl.cdiv(nb, num_parallel) * num_parallel
    inner_steps = nb_padded // num_parallel
    rows_padded = nb_padded * block_rows
    padded_total = rows_padded * LANES

    def prep(a, pad_value):
        a = a.reshape(-1)  # keep the host dtype; the f32 cast happens in-kernel
        if padded_total != n_total:
            a = jnp.pad(a, (0, padded_total - n_total), constant_values=pad_value)
        return a.reshape(rows_padded, LANES)

    xf = prep(x, PAD_LOGIT)   # padded logits contribute exactly zero to every sum
    tf = prep(target, 0)

    kernel = functools.partial(_mixed_loss_kernel, gamma=float(gamma))
    in_map = lambda p, s: (p * inner_steps + s, 0)

    partial_sums = pl.pallas_call(
        kernel,
        out_shape=jax.ShapeDtypeStruct((num_parallel, 4, SUBLANES, LANES), jnp.float32),
        grid_spec=pltpu.PrefetchScalarGridSpec(
            num_scalar_prefetch=0,
            grid=(num_parallel, inner_steps),
            in_specs=[
                pl.BlockSpec((block_rows, LANES), in_map),
                pl.BlockSpec((block_rows, LANES), in_map),
            ],
            out_specs=pl.BlockSpec(
                (None, 4, SUBLANES, LANES), lambda p, s: (p, 0, 0, 0)
            ),
        ),
        compiler_params=pltpu.CompilerParams(
            dimension_semantics=("parallel", "arbitrary"),
        ),
    )(xf, tf)

    # Tiny epilogue: one cross-lane reduce over (num_parallel, 4, 8, 128) + scalar math.
    sums = jnp.sum(partial_sums, axis=(0, 2, 3))
    focal_sum, intersection, sig_sum, tgt_sum = sums[0], sums[1], sums[2], sums[3]

    focal_mean = focal_sum / jnp.float32(n_total)
    smooth = jnp.float32(1.0)
    dice = (2.0 * intersection + smooth) / (sig_sum + tgt_sum + smooth)
    return jnp.float32(alpha) * focal_mean - jnp.log(dice)


def _reference(x, target, alpha, gamma):
    x = x.astype(jnp.float32).reshape(-1)
    t = target.astype(jnp.float32).reshape(-1)
    max_val = jnp.maximum(-x, 0.0)
    bce = x - x * t + max_val + jnp.log(jnp.exp(-max_val) + jnp.exp(-x - max_val))
    invprobs = jax.nn.log_sigmoid(-x * (t * 2.0 - 1.0))
    focal = jnp.mean(jnp.exp(invprobs * gamma) * bce)
    s = jax.nn.sigmoid(x)
    dice = (2.0 * jnp.sum(s * t) + 1.0) / (jnp.sum(s) + jnp.sum(t) + 1.0)
    return alpha * focal - jnp.log(dice)


if __name__ == "__main__":
    # MixedLoss(alpha, gamma) "parameters" (deterministic, from __init__ args)
    alpha, gamma = 10.0, 2.0

    key = jax.random.PRNGKey(0)
    k1, k2 = jax.random.split(key)
    # NCHW logits and binary target mask, as the segmentation losses expect.
    x = jax.random.normal(k1, (2, 4, 16, 16), dtype=jnp.float32)
    target = (jax.random.uniform(k2, (2, 4, 16, 16)) > 0.5).astype(jnp.float32)

    loss = mixed_loss(x, target, alpha=alpha, gamma=gamma)
    loss = jax.block_until_ready(loss)

    ref = _reference(x, target, alpha, gamma)
    assert jnp.allclose(loss, ref, rtol=1e-5, atol=1e-5), (loss, ref)
    print("KERNEL_OK")
</pallas_src>

<mosaic_0001>
module attributes {stable_mosaic.version = 11 : i64} {
  func.func @_mixed_loss_kernel(%arg0: i32, %arg1: i32, %arg2: memref<16x128xf32, #tpu.memory_space<vmem>>, %arg3: memref<16x128xf32, #tpu.memory_space<vmem>>, %arg4: memref<1x4x8x128xf32, #tpu.memory_space<vmem>>) attributes {dimension_semantics = [#tpu.dimension_semantics<parallel>, #tpu.dimension_semantics<arbitrary>], iteration_bounds = array<i64: 1, 1>, scalar_prefetch = 0 : i64, scratch_operands = 0 : i64, tpu.core_type = #tpu.core_type<tc>, window_params = [{transform_indices = @transform_0, window_bounds = array<i64: 16, 128>}, {transform_indices = @transform_1, window_bounds = array<i64: 16, 128>}, {transform_indices = @transform_2, window_bounds = array<i64: 1, 4, 8, 128>}]} {
    %c0_i32 = arith.constant 0 : i32
    %0 = arith.cmpi eq, %arg1, %c0_i32 : i32
    %1 = arith.extui %0 : i1 to i32
    %c0_i32_0 = arith.constant 0 : i32
    %2 = arith.cmpi ne, %1, %c0_i32_0 : i32
    scf.if %2 {
      %cst_49 = arith.constant 0.000000e+00 : f32
      %79 = vector.broadcast %cst_49 : f32 to vector<4x8x128xf32>
      %c0_50 = arith.constant 0 : index
      %c0_51 = arith.constant 0 : index
      %c0_52 = arith.constant 0 : index
      %c0_53 = arith.constant 0 : index
      %80 = vector.load %arg4[%c0_50, %c0_51, %c0_52, %c0_53] : memref<1x4x8x128xf32, #tpu.memory_space<vmem>>, vector<1x4x8x128xf32>
      %81 = vector.shape_cast %80 : vector<1x4x8x128xf32> to vector<4x8x128xf32>
      %82 = vector.shape_cast %79 : vector<4x8x128xf32> to vector<1x4x8x128xf32>
      tpu.vector_store %arg4[%c0_50, %c0_51, %c0_52, %c0_53], %82 {strides = array<i32>} : memref<1x4x8x128xf32, #tpu.memory_space<vmem>>, vector<1x4x8x128xf32>,
    } else {
    }
    %c0 = arith.constant 0 : index
    %c0_1 = arith.constant 0 : index
    %3 = vector.load %arg2[%c0, %c0_1] : memref<16x128xf32, #tpu.memory_space<vmem>>, vector<16x128xf32>
    %c0_2 = arith.constant 0 : index
    %c0_3 = arith.constant 0 : index
    %4 = vector.load %arg3[%c0_2, %c0_3] : memref<16x128xf32, #tpu.memory_space<vmem>>, vector<16x128xf32>
    %cst = arith.constant 0.000000e+00 : f32
    %5 = vector.broadcast %cst : f32 to vector<16x128xf32>
    %6 = arith.subf %5, %3 : vector<16x128xf32>
    %cst_4 = arith.constant 0.000000e+00 : f32
    %7 = vector.broadcast %cst_4 : f32 to vector<16x128xf32>
    %8 = arith.maximumf %6, %7 : vector<16x128xf32>
    %9 = math.absf %3 : vector<16x128xf32>
    %cst_5 = arith.constant 0.000000e+00 : f32
    %10 = vector.broadcast %cst_5 : f32 to vector<16x128xf32>
    %11 = arith.subf %10, %9 : vector<16x128xf32>
    %12 = math.exp %11 : vector<16x128xf32>
    %cst_6 = arith.constant 1.000000e+00 : f32
    %13 = vector.broadcast %cst_6 : f32 to vector<16x128xf32>
    %14 = arith.addf %13, %12 : vector<16x128xf32>
    %15 = math.log %14 : vector<16x128xf32>
    %16 = arith.addf %8, %15 : vector<16x128xf32>
    %17 = arith.mulf %3, %4 : vector<16x128xf32>
    %18 = arith.subf %3, %17 : vector<16x128xf32>
    %19 = arith.addf %18, %16 : vector<16x128xf32>
    %cst_7 = arith.constant 0.000000e+00 : f32
    %20 = vector.broadcast %cst_7 : f32 to vector<16x128xf32>
    %21 = arith.subf %20, %16 : vector<16x128xf32>
    %22 = math.exp %21 : vector<16x128xf32>
    %cst_8 = arith.constant 0.000000e+00 : f32
    %23 = vector.broadcast %cst_8 : f32 to vector<16x128xf32>
    %24 = arith.subf %23, %3 : vector<16x128xf32>
    %cst_9 = arith.constant 2.000000e+00 : f32
    %25 = vector.broadcast %cst_9 : f32 to vector<16x128xf32>
    %26 = arith.mulf %4, %25 : vector<16x128xf32>
    %cst_10 = arith.constant 1.000000e+00 : f32
    %27 = vector.broadcast %cst_10 : f32 to vector<16x128xf32>
    %28 = arith.subf %26, %27 : vector<16x128xf32>
    %29 = arith.mulf %24, %28 : vector<16x128xf32>
    %cst_11 = arith.constant 0.000000e+00 : f32
    %30 = vector.broadcast %cst_11 : f32 to vector<16x128xf32>
    %31 = arith.subf %30, %29 : vector<16x128xf32>
    %cst_12 = arith.constant 0.000000e+00 : f32
    %32 = vector.broadcast %cst_12 : f32 to vector<16x128xf32>
    %33 = arith.maximumf %31, %32 : vector<16x128xf32>
    %34 = math.absf %29 : vector<16x128xf32>
    %cst_13 = arith.constant 0.000000e+00 : f32
    %35 = vector.broadcast %cst_13 : f32 to vector<16x128xf32>
    %36 = arith.subf %35, %34 : vector<16x128xf32>
    %37 = math.exp %36 : vector<16x128xf32>
    %cst_14 = arith.constant 1.000000e+00 : f32
    %38 = vector.broadcast %cst_14 : f32 to vector<16x128xf32>
    %39 = arith.addf %38, %37 : vector<16x128xf32>
    %40 = math.log %39 : vector<16x128xf32>
    %41 = arith.addf %33, %40 : vector<16x128xf32>
    %cst_15 = arith.constant -2.000000e+00 : f32
    %42 = vector.broadcast %cst_15 : f32 to vector<16x128xf32>
    %43 = arith.mulf %42, %41 : vector<16x128xf32>
    %44 = math.exp %43 : vector<16x128xf32>
    %45 = arith.mulf %44, %19 : vector<16x128xf32>
    %c0_16 = arith.constant 0 : index
    %c0_17 = arith.constant 0 : index
    %c0_18 = arith.constant 0 : index
    %c0_19 = arith.constant 0 : index
    %46 = vector.load %arg4[%c0_16, %c0_17, %c0_18, %c0_19] : memref<1x4x8x128xf32, #tpu.memory_space<vmem>>, vector<1x1x8x128xf32>
    %47 = vector.shape_cast %46 : vector<1x1x8x128xf32> to vector<8x128xf32>
    %48 = vector.shape_cast %45 : vector<16x128xf32> to vector<2x8x128xf32>
    %cst_20 = arith.constant dense<0.000000e+00> : vector<8x128xf32>
    %49 = vector.multi_reduction <add>, %48, %cst_20 [0] : vector<2x8x128xf32> to vector<8x128xf32>
    %50 = arith.addf %47, %49 : vector<8x128xf32>
    %c0_21 = arith.constant 0 : index
    %c0_22 = arith.constant 0 : index
    %c0_23 = arith.constant 0 : index
    %c0_24 = arith.constant 0 : index
    %51 = vector.load %arg4[%c0_21, %c0_22, %c0_23, %c0_24] : memref<1x4x8x128xf32, #tpu.memory_space<vmem>>, vector<1x1x8x128xf32>
    %52 = vector.shape_cast %51 : vector<1x1x8x128xf32> to vector<8x128xf32>
    %53 = vector.shape_cast %50 : vector<8x128xf32> to vector<1x1x8x128xf32>
    tpu.vector_store %arg4[%c0_21, %c0_22, %c0_23, %c0_24], %53 {strides = array<i32>} : memref<1x4x8x128xf32, #tpu.memory_space<vmem>>, vector<1x1x8x128xf32>,
    %c0_25 = arith.constant 0 : index
    %c1 = arith.constant 1 : index
    %c0_26 = arith.constant 0 : index
    %c0_27 = arith.constant 0 : index
    %54 = vector.load %arg4[%c0_25, %c1, %c0_26, %c0_27] : memref<1x4x8x128xf32, #tpu.memory_space<vmem>>, vector<1x1x8x128xf32>
    %55 = vector.shape_cast %54 : vector<1x1x8x128xf32> to vector<8x128xf32>
    %56 = arith.mulf %22, %4 : vector<16x128xf32>
    %57 = vector.shape_cast %56 : vector<16x128xf32> to vector<2x8x128xf32>
    %cst_28 = arith.constant dense<0.000000e+00> : vector<8x128xf32>
    %58 = vector.multi_reduction <add>, %57, %cst_28 [0] : vector<2x8x128xf32> to vector<8x128xf32>
    %59 = arith.addf %55, %58 : vector<8x128xf32>
    %c0_29 = arith.constant 0 : index
    %c1_30 = arith.constant 1 : index
    %c0_31 = arith.constant 0 : index
    %c0_32 = arith.constant 0 : index
    %60 = vector.load %arg4[%c0_29, %c1_30, %c0_31, %c0_32] : memref<1x4x8x128xf32, #tpu.memory_space<vmem>>, vector<1x1x8x128xf32>
    %61 = vector.shape_cast %60 : vector<1x1x8x128xf32> to vector<8x128xf32>
    %62 = vector.shape_cast %59 : vector<8x128xf32> to vector<1x1x8x128xf32>
    tpu.vector_store %arg4[%c0_29, %c1_30, %c0_31, %c0_32], %62 {strides = array<i32>} : memref<1x4x8x128xf32, #tpu.memory_space<vmem>>, vector<1x1x8x128xf32>,
    %c0_33 = arith.constant 0 : index
    %c2 = arith.constant 2 : index
    %c0_34 = arith.constant 0 : index
    %c0_35 = arith.constant 0 : index
    %63 = vector.load %arg4[%c0_33, %c2, %c0_34, %c0_35] : memref<1x4x8x128xf32, #tpu.memory_space<vmem>>, vector<1x1x8x128xf32>
    %64 = vector.shape_cast %63 : vector<1x1x8x128xf32> to vector<8x128xf32>
    %65 = vector.shape_cast %22 : vector<16x128xf32> to vector<2x8x128xf32>
    %cst_36 = arith.constant dense<0.000000e+00> : vector<8x128xf32>
    %66 = vector.multi_reduction <add>, %65, %cst_36 [0] : vector<2x8x128xf32> to vector<8x128xf32>
    %67 = arith.addf %64, %66 : vector<8x128xf32>
    %c0_37 = arith.constant 0 : index
    %c2_38 = arith.constant 2 : index
    %c0_39 = arith.constant 0 : index
    %c0_40 = arith.constant 0 : index
    %68 = vector.load %arg4[%c0_37, %c2_38, %c0_39, %c0_40] : memref<1x4x8x128xf32, #tpu.memory_space<vmem>>, vector<1x1x8x128xf32>
    %69 = vector.shape_cast %68 : vector<1x1x8x128xf32> to vector<8x128xf32>
    %70 = vector.shape_cast %67 : vector<8x128xf32> to vector<1x1x8x128xf32>
    tpu.vector_store %arg4[%c0_37, %c2_38, %c0_39, %c0_40], %70 {strides = array<i32>} : memref<1x4x8x128xf32, #tpu.memory_space<vmem>>, vector<1x1x8x128xf32>,
    %c0_41 = arith.constant 0 : index
    %c3 = arith.constant 3 : index
    %c0_42 = arith.constant 0 : index
    %c0_43 = arith.constant 0 : index
    %71 = vector.load %arg4[%c0_41, %c3, %c0_42, %c0_43] : memref<1x4x8x128xf32, #tpu.memory_space<vmem>>, vector<1x1x8x128xf32>
    %72 = vector.shape_cast %71 : vector<1x1x8x128xf32> to vector<8x128xf32>
    %73 = vector.shape_cast %4 : vector<16x128xf32> to vector<2x8x128xf32>
    %cst_44 = arith.constant dense<0.000000e+00> : vector<8x128xf32>
    %74 = vector.multi_reduction <add>, %73, %cst_44 [0] : vector<2x8x128xf32> to vector<8x128xf32>
    %75 = arith.addf %72, %74 : vector<8x128xf32>
    %c0_45 = arith.constant 0 : index
    %c3_46 = arith.constant 3 : index
    %c0_47 = arith.constant 0 : index
    %c0_48 = arith.constant 0 : index
    %76 = vector.load %arg4[%c0_45, %c3_46, %c0_47, %c0_48] : memref<1x4x8x128xf32, #tpu.memory_space<vmem>>, vector<1x1x8x128xf32>
    %77 = vector.shape_cast %76 : vector<1x1x8x128xf32> to vector<8x128xf32>
    %78 = vector.shape_cast %75 : vector<8x128xf32> to vector<1x1x8x128xf32>
    tpu.vector_store %arg4[%c0_45, %c3_46, %c0_47, %c0_48], %78 {strides = array<i32>} : memref<1x4x8x128xf32, #tpu.memory_space<vmem>>, vector<1x1x8x128xf32>,
    return
  }
  func.func @transform_0(%arg0: i32, %arg1: i32) -> (i32, i32) {
    %c1_i32 = arith.constant 1 : i32
    %0 = arith.muli %arg0, %c1_i32 : i32
    %1 = arith.addi %0, %arg1 : i32
    %c0_i32 = arith.constant 0 : i32
    %c0_i32_0 = arith.constant 0 : i32
    return %1, %c0_i32 : i32, i32
  }
  func.func @transform_1(%arg0: i32, %arg1: i32) -> (i32, i32) {
    %c1_i32 = arith.constant 1 : i32
    %0 = arith.muli %arg0, %c1_i32 : i32
    %1 = arith.addi %0, %arg1 : i32
    %c0_i32 = arith.constant 0 : i32
    %c0_i32_0 = arith.constant 0 : i32
    return %1, %c0_i32 : i32, i32
  }
  func.func @transform_2(%arg0: i32, %arg1: i32) -> (i32, i32, i32, i32) {
    %c0_i32 = arith.constant 0 : i32
    %c0_i32_0 = arith.constant 0 : i32
    %c0_i32_1 = arith.constant 0 : i32
    %c0_i32_2 = arith.constant 0 : i32
    return %arg0, %c0_i32, %c0_i32_0, %c0_i32_1 : i32, i32, i32, i32
  }
}

</mosaic_0001>

<llo_original>
// kernel: tpu_custom_call.1
$region0: #{tpu_custom_call.1}
  #allocation0 [shape = 'u32[]', space=smem, size = 0x4, offset = 0x4, fixed_abs, tag = 'smem constant byte address 0x4 - core index']
  #allocation1 [shape = 'u32[72,128]{1,0:T(1,128)}', space=vmem, size = 0x9000, scoped, tag = 'internal scratch']
  %s0 = inlined_call_operand.hbm [shape: f32[16,128], index: 0, kind: input, shape index: {}]
  %s1 = inlined_call_operand.hbm [shape: f32[16,128], index: 1, kind: input, shape index: {}]
  %s2 = inlined_call_operand.hbm [shape: f32[1,4,8,128], index: 2, kind: output, shape index: {}]
  %s3 = sld [smem:[#allocation0]]
  $region30: #{tpu_custom_call.1} parent=0
    _
  %s5 = ssub.s32 1, %s3
  %s6 = scalar_select 0, %s5, %s3
  $region1: #{tpu_custom_call.1} parent=0
    #allocation2 [shape = 'u8[8192]{0}', space=vmem, size = 0x2000, scoped, tag = 'input window, operand 0, single buffered']
    #allocation3 [shape = 's32[1]{0}', space=sflag, size = 0x4, scoped, tag = 'scoped memory for tpu_custom_call.1']
    #allocation4 [shape = 's32[1]{0}', space=sflag, size = 0x4, scoped, tag = 'scoped memory for tpu_custom_call.1']
    #allocation5 [shape = 'u8[8192]{0}', space=vmem, size = 0x2000, scoped, tag = 'input window, operand 1, single buffered']
    #allocation6 [shape = 's32[1]{0}', space=sflag, size = 0x4, scoped, tag = 'scoped memory for tpu_custom_call.1']
    #allocation7 [shape = 'u8[16384]{0}', space=vmem, size = 0x4000, scoped, tag = 'output window, operand 0, single buffered']
    %7 = vsyncpa [#allocation3], 0
    %8 = vsyncpa [#allocation6], 0
    %9 = vsyncpa [#allocation4], 0
    // Predicated region
    $region2: #{tpu_custom_call.1} parent=1 // pred_check
      _
    $region3: #{tpu_custom_call.1} parent=1 // pred_check_branch
      %11 = sbr.rel (0) target = $region5
    $region4: #{tpu_custom_call.1} parent=1 // pred_region
      %s12 = sadd.s32 0, 0
      %s13 = smul.u32 2, %s12
      %15 = vsyncadd [#allocation3], 0
      %s16 = smul.addr %s13, 8
      %s17 = scalar_lea.hbm %s0, %s16
      %s18 = sshll.u32 %s17, 4
      %s19 = int_to_ptr.hbm [resolvable:$true] %s18
      %s20 = sshll.u32 [#allocation2], 4
      %s21 = int_to_ptr.vmem [resolvable:$true] %s20
      %26 = dma.hbm_to_vmem [thread:$0]  %s19, 256, %s21, [#allocation3], 128, 128, 8
    $region5: #{tpu_custom_call.1} parent=1 // pred_fallthru
      _
    // Predicated region
    $region6: #{tpu_custom_call.1} parent=1 // pred_check
      _
    $region7: #{tpu_custom_call.1} parent=1 // pred_check_branch
      %28 = sbr.rel (0) target = $region9
    $region8: #{tpu_custom_call.1} parent=1 // pred_region
      %s29 = sadd.s32 0, 0
      %s30 = smul.u32 2, %s29
      %32 = vsyncadd [#allocation6], 0
      %s33 = smul.addr %s30, 8
      %s34 = scalar_lea.hbm %s1, %s33
      %s35 = sshll.u32 %s34, 4
      %s36 = int_to_ptr.hbm [resolvable:$true] %s35
      %s37 = sshll.u32 [#allocation5], 4
      %s38 = int_to_ptr.vmem [resolvable:$true] %s37
      %43 = dma.hbm_to_vmem [thread:$0]  %s36, 256, %s38, [#allocation6], 128, 128, 8
    $region9: #{tpu_custom_call.1} parent=1 // pred_fallthru
      _
    // Predicated region
    $region10: #{tpu_custom_call.1} parent=1 // pred_check
      _
    $region11: #{tpu_custom_call.1} parent=1 // pred_check_branch
      %45 = sbr.rel (0) target = $region13
    $region12: #{tpu_custom_call.1} parent=1 // pred_region
      %47 = dma.done [#allocation3], 256
    $region13: #{tpu_custom_call.1} parent=1 // pred_fallthru
      _
    // Predicated region
    $region14: #{tpu_custom_call.1} parent=1 // pred_check
      _
    $region15: #{tpu_custom_call.1} parent=1 // pred_check_branch
      %49 = sbr.rel (0) target = $region17
    $region16: #{tpu_custom_call.1} parent=1 // pred_region
      %51 = dma.done [#allocation6], 256
    $region17: #{tpu_custom_call.1} parent=1 // pred_fallthru
      _
    %s52 = sadd.s32 0, 0
    %s53 = smul.u32 2, %s52
    %s54 = sadd.s32 0, 0
    %s55 = smul.u32 2, %s54
    %p56 = scmp.eq.s32.totalorder 0, 0
    // Predicated region
    $region18: #{tpu_custom_call.1} parent=1 // pred_check
      %p57 = pneg %p56
    $region19: #{tpu_custom_call.1} parent=1 // pred_check_branch
      %59 = sbr.rel (%p57) target = $region21
    $region20: #{tpu_custom_call.1} parent=1 // pred_region
      %60 = vst [vmem:[#allocation7] sm:$0xff] 0.0
      %61 = vst [vmem:[#allocation7 + $0x8] sm:$0xff] 0.0
      %62 = vst [vmem:[#allocation7 + $0x10] sm:$0xff] 0.0
      %63 = vst [vmem:[#allocation7 + $0x18] sm:$0xff] 0.0
    $region21: #{tpu_custom_call.1} parent=1 // pred_fallthru
      _
    %v64 = vld [vmem:[#allocation2] sm:$0xff]
    %v65 = vld [vmem:[#allocation2 + $0x8] sm:$0xff]
    %v66 = vld [vmem:[#allocation5] sm:$0xff]
    %v67 = vld [vmem:[#allocation5 + $0x8] sm:$0xff]
    %v68 = vsub.f32 0.0, %v64
    %v69 = vsub.f32 0.0, %v65
    %v70 = vmax.f32 %v68, 0.0
    %v71 = vmax.f32 %v69, 0.0
    %v72 = vand.u32 2147483647, %v64
    %v73 = vand.u32 2147483647, %v65
    %v74 = vsub.f32 0.0, %v72
    %v75 = vsub.f32 0.0, %v73
    %v76 = vmul.f32 %v74, 1.442695
    %v77 = vpow.pop %v76
    %v78 = vmul.f32 %v75, 1.442695
    %v79 = vpow.pop %v78
    %v80 = vadd.f32 %v77, 1.0
    %v81 = vadd.f32 %v79, 1.0
    %v82 = vlog2.pop %v80
    %v83 = vmul.f32 %v82, 0.6931472
    %v84 = vlog2.pop %v81
    %v85 = vmul.f32 %v84, 0.6931472
    %v86 = vadd.f32 %v70, %v83
    %v87 = vadd.f32 %v71, %v85
    %v88 = vmul.f32 %v64, %v66
    %v89 = vmul.f32 %v65, %v67
    %v90 = vsub.f32 %v64, %v88
    %v91 = vsub.f32 %v65, %v89
    %v92 = vadd.f32 %v90, %v86
    %v93 = vadd.f32 %v91, %v87
    %v94 = vsub.f32 0.0, %v86
    %v95 = vsub.f32 0.0, %v87
    %v96 = vmul.f32 %v94, 1.442695
    %v97 = vpow.pop %v96
    %v98 = vmul.f32 %v95, 1.442695
    %v99 = vpow.pop %v98
    %v100 = vmul.f32 %v66, 2.0
    %v101 = vmul.f32 %v67, 2.0
    %v102 = vsub.f32 %v100, 1.0
    %v103 = vsub.f32 %v101, 1.0
    %v104 = vmul.f32 %v68, %v102
    %v105 = vmul.f32 %v69, %v103
    %v106 = vsub.f32 0.0, %v104
    %v107 = vsub.f32 0.0, %v105
    %v108 = vmax.f32 %v106, 0.0
    %v109 = vmax.f32 %v107, 0.0
    %v110 = vand.u32 2147483647, %v104
    %v111 = vand.u32 2147483647, %v105
    %v112 = vsub.f32 0.0, %v110
    %v113 = vsub.f32 0.0, %v111
    %v114 = vmul.f32 %v112, 1.442695
    %v115 = vpow.pop %v114
    %v116 = vmul.f32 %v113, 1.442695
    %v117 = vpow.pop %v116
    %v118 = vadd.f32 %v115, 1.0
    %v119 = vadd.f32 %v117, 1.0
    %v120 = vlog2.pop %v118
    %v121 = vmul.f32 %v120, 0.6931472
    %v122 = vlog2.pop %v119
    %v123 = vmul.f32 %v122, 0.6931472
    %v124 = vadd.f32 %v108, %v121
    %v125 = vadd.f32 %v109, %v123
    %v126 = vmul.f32 %v124, -2.0
    %v127 = vmul.f32 %v125, -2.0
    %v128 = vmul.f32 %v126, 1.442695
    %v129 = vpow.pop %v128
    %v130 = vmul.f32 %v127, 1.442695
    %v131 = vpow.pop %v130
    %v132 = vmul.f32 %v129, %v92
    %v133 = vmul.f32 %v131, %v93
    %v134 = vld [vmem:[#allocation7] sm:$0xff]
    %v135 = vadd.f32 %v132, %v133
    %v136 = vadd.f32 %v134, %v135
    %137 = vst [vmem:[#allocation7] sm:$0xff] %v136
    %s138 = scalar_lea.vmem [#allocation7], 8
    %v139 = vld [vmem:[%s138] sm:$0xff]
    %v140 = vmul.f32 %v97, %v66
    %v141 = vmul.f32 %v99, %v67
    %v142 = vadd.f32 %v140, %v141
    %v143 = vadd.f32 %v139, %v142
    %144 = vst [vmem:[%s138] sm:$0xff] %v143
    %s145 = scalar_lea.vmem [#allocation7], 16
    %v146 = vld [vmem:[%s145] sm:$0xff]
    %v147 = vadd.f32 %v97, %v99
    %v148 = vadd.f32 %v146, %v147
    %149 = vst [vmem:[%s145] sm:$0xff] %v148
    %s150 = scalar_lea.vmem [#allocation7], 24
    %v151 = vld [vmem:[%s150] sm:$0xff]
    %v152 = vadd.f32 %v66, %v67
    %v153 = vadd.f32 %v151, %v152
    %154 = vst [vmem:[%s150] sm:$0xff] %v153
    // Predicated region
    $region22: #{tpu_custom_call.1} parent=1 // pred_check
      _
    $region23: #{tpu_custom_call.1} parent=1 // pred_check_branch
      %156 = sbr.rel (0) target = $region25
    $region24: #{tpu_custom_call.1} parent=1 // pred_region
      %158 = vsyncadd [#allocation4], 0
      %s159 = sshll.u32 [#allocation7], 4
      %s160 = int_to_ptr.vmem [resolvable:$true] %s159
      %s161 = sshll.u32 %s2, 4
      %s162 = int_to_ptr.hbm [resolvable:$true] %s161
      %167 = dma.vmem_to_hbm [thread:$0]  %s160, 512, %s162, [#allocation4], 128, 128, 8
    $region25: #{tpu_custom_call.1} parent=1 // pred_fallthru
      _
    // Predicated region
    $region26: #{tpu_custom_call.1} parent=1 // pred_check
      _
    $region27: #{tpu_custom_call.1} parent=1 // pred_check_branch
      %169 = sbr.rel (0) target = $region29
    $region28: #{tpu_custom_call.1} parent=1 // pred_region
      %171 = dma.done [#allocation4], 512
    $region29: #{tpu_custom_call.1} parent=1 // pred_fallthru
      _
    %172 = vsyncpa [#allocation3], 1
    %173 = vsyncpa [#allocation6], 1
    %174 = vsyncpa [#allocation4], 1

</llo_original>
